<compile_context>
chip_gen: v6e
topology: v6e:2x2x1
jax: 0.10.0
libtpu: 0.0.40
codegen_flags: <defaults>
</compile_context>

<pallas_src>
import functools

import jax
import jax.numpy as jnp
from jax.experimental import pallas as pl
from jax.experimental.pallas import tpu as pltpu

LANE = 128
SUBLANE = 8
TILE_ELEMS = SUBLANE * LANE          # one (8, 128) f32 tile = 1024 elements
MAX_BLOCK_TILES = 512                # (4096, 128) block: 2 MiB f32 / 1 MiB bf16


def _cdiv(a, b):
    return -(-a // b)


def _round_up(a, b):
    return _cdiv(a, b) * b


def _tile_align(*dtypes):
    """Packed-dtype alignment in (8,128)-tiles: 1 (32-bit), 2 (16-bit), 4 (8-bit)."""
    align = 1
    for dt in dtypes:
        align = max(align, 4 // max(jnp.dtype(dt).itemsize, 1))
    return align


def _dice_partial_kernel(p_ref, t_ref, out_ref, inter_acc, denom_acc, *,
                         block_tiles, block_elems, blocks_per_split,
                         num_blocks, n_splits, tail_valid):
    c = pl.program_id(0)      # split / core index ("parallel")
    j = pl.program_id(1)      # streaming block index ("arbitrary")

    @pl.when(j == 0)
    def _init():
        inter_acc[...] = jnp.zeros_like(inter_acc)
        denom_acc[...] = jnp.zeros_like(denom_acc)

    # Cast in-kernel (HBM traffic stays in native dtype); single-EUP sigmoid.
    x = p_ref[...].astype(jnp.float32)
    p = 0.5 * jnp.tanh(0.5 * x) + 0.5
    t = t_ref[...].astype(jnp.float32)

    def accum(pv, tv):
        pv3 = pv.reshape(block_tiles, SUBLANE, LANE)
        tv3 = tv.reshape(block_tiles, SUBLANE, LANE)
        # vreg-sized running sums; the cross-lane reduce happens only in finalize.
        inter_acc[...] += jnp.sum(pv3 * tv3, axis=0)
        denom_acc[...] += jnp.sum(pv3 + tv3, axis=0)

    tail_partial = tail_valid < block_elems                    # static
    total_iters = n_splits * blocks_per_split                  # static
    full_limit = num_blocks - 1 if tail_partial else num_blocks
    need_branch = tail_partial or (total_iters > num_blocks)   # static

    if not need_branch:
        accum(p, t)
    else:
        g = c * blocks_per_split + j          # global block index (unclamped)

        @pl.when(g < full_limit)
        def _full():
            accum(p, t)

        if tail_partial:
            @pl.when(g == num_blocks - 1)
            def _tail():
                row = jax.lax.broadcasted_iota(jnp.int32, p.shape, 0)
                lane = jax.lax.broadcasted_iota(jnp.int32, p.shape, 1)
                valid = row * LANE + lane < tail_valid         # static bound
                accum(jnp.where(valid, p, 0.0), jnp.where(valid, t, 0.0))
        # g >= num_blocks: phantom re-read of the last block; contributes nothing.

    @pl.when(j == blocks_per_split - 1)
    def _finalize():
        out_ref[0, 0] = jnp.sum(inter_acc[...])
        out_ref[0, 1] = jnp.sum(denom_acc[...])


@jax.jit
def dice_loss(preds, targets, smooth=1e-6):
    """Pallas equivalent of DiceLoss.forward(preds, targets) -> scalar."""
    n = preds.size
    assert n == targets.size

    align_tiles = _tile_align(preds.dtype, targets.dtype)
    align_elems = align_tiles * TILE_ELEMS

    # Flatten in native dtype, row-major (same order as torch .view(-1)).
    p_flat = preds.reshape(-1)
    t_flat = targets.reshape(-1)

    # Zero-copy 2-D view whenever n is packed-tile aligned (the common case).
    # Only lane/sublane-ragged sizes pay one small pad copy; the padded / garbage
    # tail is masked in-kernel on the last block only.
    # TODO(synk): a fully copy-free ragged path would need a manual-DMA 1-D kernel.
    n_pad = _round_up(n, align_elems)
    if n_pad != n:
        p_flat = jnp.pad(p_flat, (0, n_pad - n))
        t_flat = jnp.pad(t_flat, (0, n_pad - n))
    rows = n_pad // LANE
    p2d = p_flat.reshape(rows, LANE)
    t2d = t_flat.reshape(rows, LANE)

    # Block height: as large as possible (<= MAX_BLOCK_TILES), balanced across
    # blocks and rounded to the packed-dtype tile alignment.
    total_tiles = rows // SUBLANE
    block_tiles = _cdiv(total_tiles, _cdiv(total_tiles, MAX_BLOCK_TILES))
    block_tiles = min(_round_up(block_tiles, align_tiles),
                      total_tiles, MAX_BLOCK_TILES)
    block_rows = block_tiles * SUBLANE
    block_elems = block_rows * LANE
    num_blocks = _cdiv(rows, block_rows)

    n_splits = 2 if num_blocks >= 2 else 1
    blocks_per_split = _cdiv(num_blocks, n_splits)
    # Valid elements in the last (possibly partial / zero-padded) block — static.
    tail_valid = n - (num_blocks - 1) * block_elems

    def block_index(c, j):
        # Clamp so a phantom trailing iteration re-reads a real block; the kernel
        # skips its accumulation.
        return (jnp.minimum(c * blocks_per_split + j, num_blocks - 1), 0)

    kernel = functools.partial(
        _dice_partial_kernel,
        block_tiles=block_tiles,
        block_elems=block_elems,
        blocks_per_split=blocks_per_split,
        num_blocks=num_blocks,
        n_splits=n_splits,
        tail_valid=tail_valid,
    )

    partials = pl.pallas_call(
        kernel,
        out_shape=jax.ShapeDtypeStruct((n_splits, 2), jnp.float32),
        grid_spec=pltpu.PrefetchScalarGridSpec(
            num_scalar_prefetch=0,
            grid=(n_splits, blocks_per_split),
            in_specs=[
                pl.BlockSpec((block_rows, LANE), block_index),
                pl.BlockSpec((block_rows, LANE), block_index),
            ],
            out_specs=pl.BlockSpec(
                (1, 2), lambda c, j: (c, 0),
                memory_space=pltpu.MemorySpace.SMEM,
            ),
            scratch_shapes=[
                pltpu.VMEM((SUBLANE, LANE), jnp.float32),
                pltpu.VMEM((SUBLANE, LANE), jnp.float32),
            ],
        ),
        compiler_params=pltpu.CompilerParams(
            dimension_semantics=("parallel", "arbitrary")
        ),
    )(p2d, t2d)

    inter = jnp.sum(partials[:, 0])
    denom = jnp.sum(partials[:, 1])
    dice = (2.0 * inter + smooth) / (denom + smooth)
    return 1.0 - dice


def _dice_loss_ref(preds, targets, smooth=1e-6):
    p = jax.nn.sigmoid(preds.astype(jnp.float32)).reshape(-1)
    t = targets.astype(jnp.float32).reshape(-1)
    inter = jnp.sum(p * t)
    dice = (2.0 * inter + smooth) / (jnp.sum(p) + jnp.sum(t) + smooth)
    return 1.0 - dice


if __name__ == "__main__":
    key = jax.random.PRNGKey(0)
    k1, k2, k3, k4, k5, k6 = jax.random.split(key, 6)

    # Primary small case consistent with segmentation logits: NCHW.
    preds = jax.random.normal(k1, (2, 4, 16, 16), dtype=jnp.float32)
    targets = (jax.random.uniform(k2, (2, 4, 16, 16)) > 0.5).astype(jnp.float32)
    loss = jax.block_until_ready(dice_loss(preds, targets))
    ref = jax.block_until_ready(_dice_loss_ref(preds, targets))
    assert jnp.allclose(loss, ref, atol=1e-5, rtol=1e-5), (loss, ref)

    # Ragged size (not tile-aligned): exercises pad + gated tail-mask path.
    p_r = jax.random.normal(k3, (2, 3, 37, 53), dtype=jnp.float32)
    t_r = (jax.random.uniform(k4, (2, 3, 37, 53)) > 0.5).astype(jnp.float32)
    l_r = jax.block_until_ready(dice_loss(p_r, t_r))
    r_r = jax.block_until_ready(_dice_loss_ref(p_r, t_r))
    assert jnp.allclose(l_r, r_r, atol=1e-5, rtol=1e-4), (l_r, r_r)

    # Larger bf16 case: zero-copy reshape, multi-block streaming, 2-way split.
    p_b = jax.random.normal(k5, (2, 4, 256, 384), dtype=jnp.bfloat16)
    t_b = (jax.random.uniform(k6, (2, 4, 256, 384)) > 0.5).astype(jnp.float32)
    l_b = jax.block_until_ready(dice_loss(p_b, t_b))
    r_b = jax.block_until_ready(_dice_loss_ref(p_b, t_b))
    assert jnp.allclose(l_b, r_b, atol=1e-5, rtol=1e-4), (l_b, r_b)

    print("KERNEL_OK")
</pallas_src>

<mosaic_0001>
module attributes {stable_mosaic.version = 11 : i64} {
  func.func @_dice_partial_kernel(%arg0: i32, %arg1: i32, %arg2: memref<16x128xf32, #tpu.memory_space<vmem>>, %arg3: memref<16x128xf32, #tpu.memory_space<vmem>>, %arg4: memref<1x2xf32, #tpu.memory_space<smem>>, %arg5: memref<8x128xf32, #tpu.memory_space<vmem>>, %arg6: memref<8x128xf32, #tpu.memory_space<vmem>>) attributes {dimension_semantics = [#tpu.dimension_semantics<parallel>, #tpu.dimension_semantics<arbitrary>], iteration_bounds = array<i64: 1, 1>, scalar_prefetch = 0 : i64, scratch_operands = 2 : i64, tpu.core_type = #tpu.core_type<tc>, window_params = [{transform_indices = @transform_0, window_bounds = array<i64: 16, 128>}, {transform_indices = @transform_1, window_bounds = array<i64: 16, 128>}, {transform_indices = @transform_2, window_bounds = array<i64: 1, 2>}]} {
    %c0_i32 = arith.constant 0 : i32
    %0 = arith.cmpi eq, %arg1, %c0_i32 : i32
    %1 = arith.extui %0 : i1 to i32
    %c0_i32_0 = arith.constant 0 : i32
    %2 = arith.cmpi ne, %1, %c0_i32_0 : i32
    scf.if %2 {
      %cst_18 = arith.constant 0.000000e+00 : f32
      %27 = vector.broadcast %cst_18 : f32 to vector<8x128xf32>
      %c0_19 = arith.constant 0 : index
      %c0_20 = arith.constant 0 : index
      %28 = vector.load %arg5[%c0_19, %c0_20] : memref<8x128xf32, #tpu.memory_space<vmem>>, vector<8x128xf32>
      tpu.vector_store %arg5[%c0_19, %c0_20], %27 {strides = array<i32>} : memref<8x128xf32, #tpu.memory_space<vmem>>, vector<8x128xf32>,
      %cst_21 = arith.constant 0.000000e+00 : f32
      %29 = vector.broadcast %cst_21 : f32 to vector<8x128xf32>
      %c0_22 = arith.constant 0 : index
      %c0_23 = arith.constant 0 : index
      %30 = vector.load %arg6[%c0_22, %c0_23] : memref<8x128xf32, #tpu.memory_space<vmem>>, vector<8x128xf32>
      tpu.vector_store %arg6[%c0_22, %c0_23], %29 {strides = array<i32>} : memref<8x128xf32, #tpu.memory_space<vmem>>, vector<8x128xf32>,
    } else {
    }
    %c0 = arith.constant 0 : index
    %c0_1 = arith.constant 0 : index
    %3 = vector.load %arg2[%c0, %c0_1] : memref<16x128xf32, #tpu.memory_space<vmem>>, vector<16x128xf32>
    %cst = arith.constant 5.000000e-01 : f32
    %4 = vector.broadcast %cst : f32 to vector<16x128xf32>
    %5 = arith.mulf %4, %3 : vector<16x128xf32>
    %6 = math.tanh %5 : vector<16x128xf32>
    %cst_2 = arith.constant 5.000000e-01 : f32
    %7 = vector.broadcast %cst_2 : f32 to vector<16x128xf32>
    %8 = arith.mulf %7, %6 : vector<16x128xf32>
    %cst_3 = arith.constant 5.000000e-01 : f32
    %9 = vector.broadcast %cst_3 : f32 to vector<16x128xf32>
    %10 = arith.addf %8, %9 : vector<16x128xf32>
    %c0_4 = arith.constant 0 : index
    %c0_5 = arith.constant 0 : index
    %11 = vector.load %arg3[%c0_4, %c0_5] : memref<16x128xf32, #tpu.memory_space<vmem>>, vector<16x128xf32>
    %12 = vector.shape_cast %10 : vector<16x128xf32> to vector<2x8x128xf32>
    %13 = vector.shape_cast %11 : vector<16x128xf32> to vector<2x8x128xf32>
    %c0_6 = arith.constant 0 : index
    %c0_7 = arith.constant 0 : index
    %14 = vector.load %arg5[%c0_6, %c0_7] : memref<8x128xf32, #tpu.memory_space<vmem>>, vector<8x128xf32>
    %15 = arith.mulf %12, %13 : vector<2x8x128xf32>
    %cst_8 = arith.constant dense<0.000000e+00> : vector<8x128xf32>
    %16 = vector.multi_reduction <add>, %15, %cst_8 [0] : vector<2x8x128xf32> to vector<8x128xf32>
    %17 = arith.addf %14, %16 : vector<8x128xf32>
    %c0_9 = arith.constant 0 : index
    %c0_10 = arith.constant 0 : index
    %18 = vector.load %arg5[%c0_9, %c0_10] : memref<8x128xf32, #tpu.memory_space<vmem>>, vector<8x128xf32>
    tpu.vector_store %arg5[%c0_9, %c0_10], %17 {strides = array<i32>} : memref<8x128xf32, #tpu.memory_space<vmem>>, vector<8x128xf32>,
    %c0_11 = arith.constant 0 : index
    %c0_12 = arith.constant 0 : index
    %19 = vector.load %arg6[%c0_11, %c0_12] : memref<8x128xf32, #tpu.memory_space<vmem>>, vector<8x128xf32>
    %20 = arith.addf %12, %13 : vector<2x8x128xf32>
    %cst_13 = arith.constant dense<0.000000e+00> : vector<8x128xf32>
    %21 = vector.multi_reduction <add>, %20, %cst_13 [0] : vector<2x8x128xf32> to vector<8x128xf32>
    %22 = arith.addf %19, %21 : vector<8x128xf32>
    %c0_14 = arith.constant 0 : index
    %c0_15 = arith.constant 0 : index
    %23 = vector.load %arg6[%c0_14, %c0_15] : memref<8x128xf32, #tpu.memory_space<vmem>>, vector<8x128xf32>
    tpu.vector_store %arg6[%c0_14, %c0_15], %22 {strides = array<i32>} : memref<8x128xf32, #tpu.memory_space<vmem>>, vector<8x128xf32>,
    %c0_i32_16 = arith.constant 0 : i32
    %24 = arith.cmpi eq, %arg1, %c0_i32_16 : i32
    %25 = arith.extui %24 : i1 to i32
    %c0_i32_17 = arith.constant 0 : i32
    %26 = arith.cmpi ne, %25, %c0_i32_17 : i32
    scf.if %26 {
      %c0_18 = arith.constant 0 : index
      %c0_19 = arith.constant 0 : index
      %27 = vector.load %arg5[%c0_18, %c0_19] : memref<8x128xf32, #tpu.memory_space<vmem>>, vector<8x128xf32>
      %28 = vector.shape_cast %27 : vector<8x128xf32> to vector<1x8x128xf32>
      %cst_20 = arith.constant dense<0.000000e+00> : vector<1xf32>
      %29 = vector.multi_reduction <add>, %28, %cst_20 [1, 2] : vector<1x8x128xf32> to vector<1xf32>
      %30 = vector.shape_cast %29 : vector<1xf32> to vector<1x1x1xf32>
      %31 = vector.extract %30[0, 0, 0] : f32 from vector<1x1x1xf32>
      %c0_21 = arith.constant 0 : index
      %c0_22 = arith.constant 0 : index
      %32 = memref.load %arg4[%c0_21, %c0_22] : memref<1x2xf32, #tpu.memory_space<smem>>
      memref.store %31, %arg4[%c0_21, %c0_22] : memref<1x2xf32, #tpu.memory_space<smem>>
      %c0_23 = arith.constant 0 : index
      %c0_24 = arith.constant 0 : index
      %33 = vector.load %arg6[%c0_23, %c0_24] : memref<8x128xf32, #tpu.memory_space<vmem>>, vector<8x128xf32>
      %34 = vector.shape_cast %33 : vector<8x128xf32> to vector<1x8x128xf32>
      %cst_25 = arith.constant dense<0.000000e+00> : vector<1xf32>
      %35 = vector.multi_reduction <add>, %34, %cst_25 [1, 2] : vector<1x8x128xf32> to vector<1xf32>
      %36 = vector.shape_cast %35 : vector<1xf32> to vector<1x1x1xf32>
      %37 = vector.extract %36[0, 0, 0] : f32 from vector<1x1x1xf32>
      %c0_26 = arith.constant 0 : index
      %c1 = arith.constant 1 : index
      %38 = memref.load %arg4[%c0_26, %c1] : memref<1x2xf32, #tpu.memory_space<smem>>
      memref.store %37, %arg4[%c0_26, %c1] : memref<1x2xf32, #tpu.memory_space<smem>>
    } else {
    }
    return
  }
  func.func @transform_0(%arg0: i32, %arg1: i32) -> (i32, i32) {
    %c1_i32 = arith.constant 1 : i32
    %0 = arith.muli %arg0, %c1_i32 : i32
    %1 = arith.addi %0, %arg1 : i32
    %c0_i32 = arith.constant 0 : i32
    %2 = arith.minsi %1, %c0_i32 : i32
    %c0_i32_0 = arith.constant 0 : i32
    %c0_i32_1 = arith.constant 0 : i32
    return %2, %c0_i32_0 : i32, i32
  }
  func.func @transform_1(%arg0: i32, %arg1: i32) -> (i32, i32) {
    %c1_i32 = arith.constant 1 : i32
    %0 = arith.muli %arg0, %c1_i32 : i32
    %1 = arith.addi %0, %arg1 : i32
    %c0_i32 = arith.constant 0 : i32
    %2 = arith.minsi %1, %c0_i32 : i32
    %c0_i32_0 = arith.constant 0 : i32
    %c0_i32_1 = arith.constant 0 : i32
    return %2, %c0_i32_0 : i32, i32
  }
  func.func @transform_2(%arg0: i32, %arg1: i32) -> (i32, i32) {
    %c0_i32 = arith.constant 0 : i32
    %c0_i32_0 = arith.constant 0 : i32
    return %arg0, %c0_i32 : i32, i32
  }
}

</mosaic_0001>

<llo_original>
// kernel: dice_loss.1
$region0: #{dice_loss.1}
  #allocation0 [shape = 'u32[]', space=smem, size = 0x4, offset = 0x4, fixed_abs, tag = 'smem constant byte address 0x4 - core index']
  #allocation1 [shape = 'u32[144,128]{1,0:T(1,128)}', space=vmem, size = 0x12000, scoped, tag = 'internal scratch']
  #allocation2 [shape = 'f32[8,128]{1,0:T(8,128)}', space=vmem, size = 0x1000, scoped, tag = 'scratch operand']
  #allocation3 [shape = 'f32[8,128]{1,0:T(8,128)}', space=vmem, size = 0x1000, scoped, tag = 'scratch operand']
  %s0 = inlined_call_operand.vmem [shape: f32[16,128], index: 0, kind: input, shape index: {}]
  %s1 = inlined_call_operand.vmem [shape: f32[16,128], index: 1, kind: input, shape index: {}]
  %s2 = inlined_call_operand.vmem [shape: f32[1,2], index: 2, kind: output, shape index: {}]
  %s3 = sld [smem:[#allocation0]]
  $region26: #{dice_loss.1} parent=0
    _
  %s5 = ssub.s32 1, %s3
  %s6 = scalar_select 0, %s5, %s3
  $region1: #{dice_loss.1} parent=0
    #allocation4 [shape = 'u8[512]{0}', space=smem, size = 0x200, scoped, tag = 'output window, operand 0, single buffered']
    #allocation5 [shape = 's32[1]{0}', space=sflag, size = 0x4, scoped, tag = 'scoped memory for dice_loss.1']
    %7 = vsyncpa [#allocation5], 0
    // Predicated region
    $region2: #{dice_loss.1} parent=1 // pred_check
      _
    $region3: #{dice_loss.1} parent=1 // pred_check_branch
      %9 = sbr.rel (0) target = $region5
    $region4: #{dice_loss.1} parent=1 // pred_region
      %s10 = sadd.s32 0, 0
      %p11 = scmp.lt.s32.totalorder %s10, 0
      %s12 = scalar_select %p11, %s10, 0
      %s13 = smul.u32 2, %s12
      %p14 = scmp.lt.s32.totalorder %s13, 1
      %s15 = scalar_select %p14, %s13, 1
      %s16 = smul.addr %s15, 8
      %s17 = scalar_lea.vmem %s0, %s16
      %s18 = sadd.s32 0, 0
      %p19 = scmp.lt.s32.totalorder %s18, 0
      %s20 = scalar_select %p19, %s18, 0
      %s21 = smul.u32 2, %s20
    $region5: #{dice_loss.1} parent=1 // pred_fallthru
      _
    // Predicated region
    $region6: #{dice_loss.1} parent=1 // pred_check
      _
    $region7: #{dice_loss.1} parent=1 // pred_check_branch
      %23 = sbr.rel (0) target = $region9
    $region8: #{dice_loss.1} parent=1 // pred_region
      %s24 = sadd.s32 0, 0
      %p25 = scmp.lt.s32.totalorder %s24, 0
      %s26 = scalar_select %p25, %s24, 0
      %s27 = smul.u32 2, %s26
      %p28 = scmp.lt.s32.totalorder %s27, 1
      %s29 = scalar_select %p28, %s27, 1
      %s30 = smul.addr %s29, 8
      %s31 = scalar_lea.vmem %s1, %s30
      %s32 = sadd.s32 0, 0
      %p33 = scmp.lt.s32.totalorder %s32, 0
      %s34 = scalar_select %p33, %s32, 0
      %s35 = smul.u32 2, %s34
    $region9: #{dice_loss.1} parent=1 // pred_fallthru
      _
    %s36 = sadd.s32 0, 0
    %p37 = scmp.lt.s32.totalorder %s36, 0
    %s38 = scalar_select %p37, %s36, 0
    %s39 = smul.u32 2, %s38
    %p40 = scmp.lt.s32.totalorder %s39, 1
    %s41 = scalar_select %p40, %s39, 1
    %s42 = smul.addr %s41, 8
    %s43 = scalar_lea.vmem %s0, %s42
    %s44 = sadd.s32 0, 0
    %p45 = scmp.lt.s32.totalorder %s44, 0
    %s46 = scalar_select %p45, %s44, 0
    %s47 = smul.u32 2, %s46
    %p48 = scmp.lt.s32.totalorder %s47, 1
    %s49 = scalar_select %p48, %s47, 1
    %s50 = smul.addr %s49, 8
    %s51 = scalar_lea.vmem %s1, %s50
    %s52 = sadd.s32 0, 0
    %p53 = scmp.lt.s32.totalorder %s52, 0
    %s54 = scalar_select %p53, %s52, 0
    %s55 = smul.u32 2, %s54
    %p56 = scmp.lt.s32.totalorder %s55, 1
    %s57 = scalar_select %p56, %s55, 1
    %s58 = smul.addr %s57, 8
    %s59 = scalar_lea.vmem %s0, %s58
    %s60 = sadd.s32 0, 0
    %p61 = scmp.lt.s32.totalorder %s60, 0
    %s62 = scalar_select %p61, %s60, 0
    %s63 = smul.u32 2, %s62
    %s64 = sadd.s32 0, 0
    %p65 = scmp.lt.s32.totalorder %s64, 0
    %s66 = scalar_select %p65, %s64, 0
    %s67 = smul.u32 2, %s66
    %p68 = scmp.lt.s32.totalorder %s67, 1
    %s69 = scalar_select %p68, %s67, 1
    %s70 = smul.addr %s69, 8
    %s71 = scalar_lea.vmem %s1, %s70
    %s72 = sadd.s32 0, 0
    %p73 = scmp.lt.s32.totalorder %s72, 0
    %s74 = scalar_select %p73, %s72, 0
    %s75 = smul.u32 2, %s74
    %p76 = scmp.eq.s32.totalorder 0, 0
    // Predicated region
    $region10: #{dice_loss.1} parent=1 // pred_check
      %p77 = pneg %p76
    $region11: #{dice_loss.1} parent=1 // pred_check_branch
      %79 = sbr.rel (%p77) target = $region13
    $region12: #{dice_loss.1} parent=1 // pred_region
      %80 = vst [vmem:[#allocation2] sm:$0xff] 0.0
      %81 = vst [vmem:[#allocation3] sm:$0xff] 0.0
    $region13: #{dice_loss.1} parent=1 // pred_fallthru
      _
    %v82 = vld [vmem:[%s59] sm:$0xff]
    %v83 = vld [vmem:[%s59 + $0x8] sm:$0xff]
    %v84 = vmul.f32 %v82, 0.5
    %v85 = vmul.f32 %v83, 0.5
    %v86 = vtanh.pop %v84
    %v87 = vtanh.pop %v85
    %v88 = vmul.f32 %v86, 0.5
    %v89 = vmul.f32 %v87, 0.5
    %v90 = vadd.f32 %v88, 0.5
    %v91 = vadd.f32 %v89, 0.5
    %v92 = vld [vmem:[%s71] sm:$0xff]
    %v93 = vld [vmem:[%s71 + $0x8] sm:$0xff]
    %v94 = vld [vmem:[#allocation2] sm:$0xff]
    %v95 = vmul.f32 %v90, %v92
    %v96 = vmul.f32 %v91, %v93
    %v97 = vadd.f32 %v95, %v96
    %v98 = vadd.f32 %v94, %v97
    %99 = vst [vmem:[#allocation2] sm:$0xff] %v98
    %v100 = vld [vmem:[#allocation3] sm:$0xff]
    %v101 = vadd.f32 %v90, %v92
    %v102 = vadd.f32 %v91, %v93
    %v103 = vadd.f32 %v101, %v102
    %v104 = vadd.f32 %v100, %v103
    %105 = vst [vmem:[#allocation3] sm:$0xff] %v104
    // Predicated region
    $region14: #{dice_loss.1} parent=1 // pred_check
      %p106 = pneg %p76
    $region15: #{dice_loss.1} parent=1 // pred_check_branch
      %108 = sbr.rel (%p106) target = $region17
    $region16: #{dice_loss.1} parent=1 // pred_region
      %v109 = vld [vmem:[#allocation2] sm:$0xff]
      %110 = vadd.xlane.f32.xlu0 %v109
      %v111 = vpop.xlane.xlu0 %110
      %v112 = vrot.slane %v111, 4
      %v113 = vadd.f32 %v111, %v112
      %v114 = vrot.slane %v113, 2
      %v115 = vadd.f32 %v113, %v114
      %v116 = vrot.slane %v115, 1
      %v117 = vadd.f32 %v115, %v116
      %s118 = vtos %v117
      %s119 = scalar_lea.smem [#allocation4], 0
      %120 = sst [smem:[%s119]] %s118
      %v121 = vld [vmem:[#allocation3] sm:$0xff]
      %122 = vadd.xlane.f32.xlu0 %v121
      %v123 = vpop.xlane.xlu0 %122
      %v124 = vrot.slane %v123, 4
      %v125 = vadd.f32 %v123, %v124
      %v126 = vrot.slane %v125, 2
      %v127 = vadd.f32 %v125, %v126
      %v128 = vrot.slane %v127, 1
      %v129 = vadd.f32 %v127, %v128
      %s130 = vtos %v129
      %s131 = scalar_lea.smem [#allocation4], 1
      %132 = sst [smem:[%s131]] %s130
    $region17: #{dice_loss.1} parent=1 // pred_fallthru
      _
    // Predicated region
    $region18: #{dice_loss.1} parent=1 // pred_check
      _
    $region19: #{dice_loss.1} parent=1 // pred_check_branch
      %134 = sbr.rel (0) target = $region21
    $region20: #{dice_loss.1} parent=1 // pred_region
      %s136 = ssub.s32 16, 16
      %137 = vsyncadd [#allocation5], %s136
      %s139 = sshll.u32 %s2, 4
      %s140 = int_to_ptr.vmem [resolvable:$true] %s139
      %142 = dma.smem_to_vmem [#allocation4], 16, %s140, [#allocation5]
    $region21: #{dice_loss.1} parent=1 // pred_fallthru
      _
    // Predicated region
    $region22: #{dice_loss.1} parent=1 // pred_check
      _
    $region23: #{dice_loss.1} parent=1 // pred_check_branch
      %144 = sbr.rel (0) target = $region25
    $region24: #{dice_loss.1} parent=1 // pred_region
      %145 = dma.done [#allocation5], 16
    $region25: #{dice_loss.1} parent=1 // pred_fallthru
      _
    %146 = sfence
    %147 = vsyncpa [#allocation5], 1

</llo_original>
